<compile_context>
chip_gen: v7x
topology: tpu7x:2x2x1
jax: 0.10.0
libtpu: 0.0.40
codegen_flags: <defaults>
</compile_context>

<pallas_src>
import jax
import jax.numpy as jnp
from jax.experimental import pallas as pl
from jax.experimental.pallas import tpu as pltpu

LANES = 128  # one lane tile; fused hidden (2*H) and action_dim+1 must fit here


def _round_up(n, m):
    return -(-n // m) * m


def _slab_layout(state_dim):
    """Row offsets of the packed parameter slab."""
    s_rows = _round_up(state_dim, 8)
    off_w2 = s_rows                 # fused layer-2 weight  [128, 128]
    off_w3 = off_w2 + LANES         # fused layer-3 weight  [128, 128]
    off_b = off_w3 + LANES          # 3 bias rows (b1, b2, b3)
    rows = off_b + 8                # pad bias block to a full sublane tile
    return off_w2, off_w3, off_b, rows


def make_ppo_kernel(state_dim, action_dim, hidden_size):
    S, A, H = state_dim, action_dim, hidden_size
    H2 = 2 * H
    assert H2 <= LANES and (A + 1) <= LANES, (
        "fused kernel assumes 2*hidden and action_dim+1 fit in one 128-lane tile")
    off_w2, off_w3, off_b, slab_rows = _slab_layout(S)

    def kernel(x_ref, slab_ref, out_ref):
        x = x_ref[...]                                     # [TB, S]
        b1 = slab_ref[off_b:off_b + 1, :]                  # [1, 128]
        b2 = slab_ref[off_b + 1:off_b + 2, :]
        b3 = slab_ref[off_b + 2:off_b + 3, :]

        # fused actor|critic MLP: 3 MXU pushes, everything 128-lane dense
        h = jnp.tanh(
            jnp.dot(x, slab_ref[0:S, :], preferred_element_type=jnp.float32) + b1)
        h = jnp.tanh(
            jnp.dot(h, slab_ref[off_w2:off_w2 + LANES, :],
                    preferred_element_type=jnp.float32) + b2)
        z = jnp.dot(h, slab_ref[off_w3:off_w3 + LANES, :],
                    preferred_element_type=jnp.float32) + b3

        # masked softmax over the actor lanes (0..A-1); value sits in lane A
        lane = jax.lax.broadcasted_iota(jnp.int32, z.shape, 1)
        is_actor = lane < A
        logits = jnp.where(is_actor, z, jnp.float32(-1e30))
        m = jnp.max(logits, axis=-1, keepdims=True)
        e = jnp.exp(logits - m)                            # masked lanes -> 0
        s = jnp.sum(e, axis=-1, keepdims=True)
        r = pl.reciprocal(s, approx=True)                  # EUP vrcp
        r = r * (2.0 - s * r)                              # one Newton step (keeps 1e-5)
        probs = e * r

        # single lane-dense store: probs in lanes <A, value in lane A, 0 elsewhere
        out_ref[...] = jnp.where(is_actor, probs,
                                 jnp.where(lane == A, z, 0.0))

    return kernel, slab_rows


def pack_params(p, state_dim, action_dim, hidden_size):
    """Pack the 12 PPO parameters into one lane-padded f32 slab."""
    S, A, H = state_dim, action_dim, hidden_size
    H2 = 2 * H
    off_w2, off_w3, off_b, rows = _slab_layout(S)
    slab = jnp.zeros((rows, LANES), jnp.float32)
    # layer 1: [aw1 | cw1]
    slab = slab.at[0:S, 0:H].set(p["aw1"])
    slab = slab.at[0:S, H:H2].set(p["cw1"])
    # layer 2: block-diag(aw2, cw2)
    slab = slab.at[off_w2:off_w2 + H, 0:H].set(p["aw2"])
    slab = slab.at[off_w2 + H:off_w2 + H2, H:H2].set(p["cw2"])
    # layer 3: actor logits cols 0..A-1, critic value col A
    slab = slab.at[off_w3:off_w3 + H, 0:A].set(p["aw3"])
    slab = slab.at[off_w3 + H:off_w3 + H2, A:A + 1].set(p["cw3"])
    # biases (one row each)
    slab = slab.at[off_b, 0:H].set(p["ab1"][0])
    slab = slab.at[off_b, H:H2].set(p["cb1"][0])
    slab = slab.at[off_b + 1, 0:H].set(p["ab2"][0])
    slab = slab.at[off_b + 1, H:H2].set(p["cb2"][0])
    slab = slab.at[off_b + 2, 0:A].set(p["ab3"][0])
    slab = slab.at[off_b + 2, A].set(p["cb3"][0, 0])
    return slab


def ppo_forward(x, slab, state_dim, action_dim, hidden_size, *, block_batch=512):
    """x: [B, state_dim] f32. Returns (probs [B, action_dim], value [B, 1])."""
    B, S = x.shape
    assert S == state_dim
    kernel, slab_rows = make_ppo_kernel(state_dim, action_dim, hidden_size)
    assert slab.shape == (slab_rows, LANES)

    # batch tiling: one block if small, else 512-row tiles (multiple of 8)
    TB = B if B <= block_batch else block_batch
    Bp = _round_up(B, TB)
    xp = x if Bp == B else jnp.pad(x, ((0, Bp - B), (0, 0)))

    out = pl.pallas_call(
        kernel,
        out_shape=jax.ShapeDtypeStruct((Bp, LANES), jnp.float32),
        grid_spec=pltpu.PrefetchScalarGridSpec(
            num_scalar_prefetch=0,
            grid=(Bp // TB,),
            in_specs=[
                pl.BlockSpec((TB, S), lambda i: (i, 0)),          # batch-tiled x
                pl.BlockSpec((slab_rows, LANES), lambda i: (0, 0)),  # resident weights
            ],
            out_specs=pl.BlockSpec((TB, LANES), lambda i: (i, 0)),   # lane-dense output
        ),
        compiler_params=pltpu.CompilerParams(
            dimension_semantics=("parallel",),   # shard batch grid across TCs (v7x)
        ),
    )(xp, slab)

    probs = out[:B, :action_dim]
    value = out[:B, action_dim:action_dim + 1]
    return probs, value


def init_params(key, state_dim, action_dim, hidden_size):
    """Deterministic synthetic parameters (weights stored as [in, out])."""
    ks = jax.random.split(key, 12)

    def lin(kw, kb, fan_in, fan_out):
        scale = 1.0 / jnp.sqrt(jnp.float32(fan_in))
        w = jax.random.normal(kw, (fan_in, fan_out), jnp.float32) * scale
        b = jax.random.normal(kb, (1, fan_out), jnp.float32) * scale
        return w, b

    aw1, ab1 = lin(ks[0], ks[1], state_dim, hidden_size)
    aw2, ab2 = lin(ks[2], ks[3], hidden_size, hidden_size)
    aw3, ab3 = lin(ks[4], ks[5], hidden_size, action_dim)
    cw1, cb1 = lin(ks[6], ks[7], state_dim, hidden_size)
    cw2, cb2 = lin(ks[8], ks[9], hidden_size, hidden_size)
    cw3, cb3 = lin(ks[10], ks[11], hidden_size, 1)
    return dict(
        aw1=aw1, ab1=ab1, aw2=aw2, ab2=ab2, aw3=aw3, ab3=ab3,
        cw1=cw1, cb1=cb1, cw2=cw2, cb2=cb2, cw3=cw3, cb3=cb3,
    )


def ppo_reference(x, p):
    """Pure-JAX reference matching the PyTorch forward."""
    h = jnp.tanh(x @ p["aw1"] + p["ab1"])
    h = jnp.tanh(h @ p["aw2"] + p["ab2"])
    probs = jax.nn.softmax(h @ p["aw3"] + p["ab3"], axis=-1)
    g = jnp.tanh(x @ p["cw1"] + p["cb1"])
    g = jnp.tanh(g @ p["cw2"] + p["cb2"])
    value = g @ p["cw3"] + p["cb3"]
    return probs, value


if __name__ == "__main__":
    state_dim, action_dim, hidden_size = 16, 4, 32
    batch = 8

    key = jax.random.PRNGKey(0)
    kx, kp = jax.random.split(key)
    x = jax.random.normal(kx, (batch, state_dim), jnp.float32)
    params = init_params(kp, state_dim, action_dim, hidden_size)
    slab = pack_params(params, state_dim, action_dim, hidden_size)

    probs, value = ppo_forward(x, slab, state_dim, action_dim, hidden_size)
    jax.block_until_ready((probs, value))

    ref_probs, ref_value = ppo_reference(x, params)
    assert probs.shape == (batch, action_dim)
    assert value.shape == (batch, 1)
    assert jnp.allclose(probs, ref_probs, atol=1e-5, rtol=1e-5)
    assert jnp.allclose(value, ref_value, atol=1e-5, rtol=1e-5)
    assert jnp.allclose(jnp.sum(probs, axis=-1), 1.0, atol=1e-5)

    print("KERNEL_OK")
</pallas_src>

<mosaic_0001>
module attributes {stable_mosaic.version = 11 : i64} {
  func.func @kernel(%arg0: i32, %arg1: memref<8x16xf32, #tpu.memory_space<vmem>>, %arg2: memref<280x128xf32, #tpu.memory_space<vmem>>, %arg3: memref<8x128xf32, #tpu.memory_space<vmem>>) attributes {dimension_semantics = [#tpu.dimension_semantics<parallel>], iteration_bounds = array<i64: 1>, scalar_prefetch = 0 : i64, scratch_operands = 0 : i64, tpu.core_type = #tpu.core_type<tc>, window_params = [{transform_indices = @transform_0, window_bounds = array<i64: 8, 16>}, {pipeline_mode = #tpu.pipeline_mode<synchronous>, transform_indices = @transform_1, window_bounds = array<i64: 280, 128>}, {transform_indices = @transform_2, window_bounds = array<i64: 8, 128>}]} {
    %c0 = arith.constant 0 : index
    %c0_0 = arith.constant 0 : index
    %0 = vector.load %arg1[%c0, %c0_0] : memref<8x16xf32, #tpu.memory_space<vmem>>, vector<8x16xf32>
    %c272 = arith.constant 272 : index
    %c0_1 = arith.constant 0 : index
    %1 = vector.load %arg2[%c272, %c0_1] : memref<280x128xf32, #tpu.memory_space<vmem>>, vector<1x128xf32>
    %c273 = arith.constant 273 : index
    %c0_2 = arith.constant 0 : index
    %2 = vector.load %arg2[%c273, %c0_2] : memref<280x128xf32, #tpu.memory_space<vmem>>, vector<1x128xf32>
    %c274 = arith.constant 274 : index
    %c0_3 = arith.constant 0 : index
    %3 = vector.load %arg2[%c274, %c0_3] : memref<280x128xf32, #tpu.memory_space<vmem>>, vector<1x128xf32>
    %c0_4 = arith.constant 0 : index
    %c0_5 = arith.constant 0 : index
    %4 = vector.load %arg2[%c0_4, %c0_5] : memref<280x128xf32, #tpu.memory_space<vmem>>, vector<16x128xf32>
    %cst = arith.constant dense<0.000000e+00> : vector<8x128xf32>
    %5 = tpu.matmul %0, %4, %cst {dimension_numbers = #tpu.dot_dimension_numbers<[1], [0], [0], [1], [0, 0, 1, 1], [], []>} : vector<8x16xf32>, vector<16x128xf32>, vector<8x128xf32> -> vector<8x128xf32>
    %6 = vector.broadcast %1 : vector<1x128xf32> to vector<8x128xf32>
    %7 = arith.addf %5, %6 : vector<8x128xf32>
    %8 = math.tanh %7 : vector<8x128xf32>
    %c16 = arith.constant 16 : index
    %c0_6 = arith.constant 0 : index
    %9 = vector.load %arg2[%c16, %c0_6] : memref<280x128xf32, #tpu.memory_space<vmem>>, vector<128x128xf32>
    %cst_7 = arith.constant dense<0.000000e+00> : vector<8x128xf32>
    %10 = tpu.matmul %8, %9, %cst_7 {dimension_numbers = #tpu.dot_dimension_numbers<[1], [0], [0], [1], [0, 0, 1, 1], [], []>} : vector<8x128xf32>, vector<128x128xf32>, vector<8x128xf32> -> vector<8x128xf32>
    %11 = vector.broadcast %2 : vector<1x128xf32> to vector<8x128xf32>
    %12 = arith.addf %10, %11 : vector<8x128xf32>
    %13 = math.tanh %12 : vector<8x128xf32>
    %c144 = arith.constant 144 : index
    %c0_8 = arith.constant 0 : index
    %14 = vector.load %arg2[%c144, %c0_8] : memref<280x128xf32, #tpu.memory_space<vmem>>, vector<128x128xf32>
    %cst_9 = arith.constant dense<0.000000e+00> : vector<8x128xf32>
    %15 = tpu.matmul %13, %14, %cst_9 {dimension_numbers = #tpu.dot_dimension_numbers<[1], [0], [0], [1], [0, 0, 1, 1], [], []>} : vector<8x128xf32>, vector<128x128xf32>, vector<8x128xf32> -> vector<8x128xf32>
    %16 = vector.broadcast %3 : vector<1x128xf32> to vector<8x128xf32>
    %17 = arith.addf %15, %16 : vector<8x128xf32>
    %18 = tpu.iota {dimensions = array<i32: 1>} : vector<8x128xi32>
    %c4_i32 = arith.constant 4 : i32
    %19 = vector.broadcast %c4_i32 : i32 to vector<8x128xi32>
    %20 = arith.cmpi slt, %18, %19 : vector<8x128xi32>
    %cst_10 = arith.constant -1.000000e+30 : f32
    %21 = vector.broadcast %cst_10 : f32 to vector<8x128xf32>
    %22 = arith.select %20, %17, %21 : vector<8x128xi1>, vector<8x128xf32>
    %cst_11 = arith.constant dense<0xFF800000> : vector<8xf32>
    %23 = vector.multi_reduction <maximumf>, %22, %cst_11 [1] : vector<8x128xf32> to vector<8xf32>
    %24 = vector.shape_cast %23 : vector<8xf32> to vector<8x1xf32>
    %25 = vector.broadcast %24 : vector<8x1xf32> to vector<8x128xf32>
    %26 = arith.subf %22, %25 : vector<8x128xf32>
    %27 = math.exp %26 : vector<8x128xf32>
    %cst_12 = arith.constant dense<0.000000e+00> : vector<8xf32>
    %28 = vector.multi_reduction <add>, %27, %cst_12 [1] : vector<8x128xf32> to vector<8xf32>
    %29 = vector.shape_cast %28 : vector<8xf32> to vector<8x1xf32>
    %30 = tpu.reciprocal %29 {approx = true} : vector<8x1xf32> -> vector<8x1xf32>
    %31 = arith.mulf %29, %30 : vector<8x1xf32>
    %cst_13 = arith.constant 2.000000e+00 : f32
    %32 = vector.broadcast %cst_13 : f32 to vector<8x1xf32>
    %33 = arith.subf %32, %31 : vector<8x1xf32>
    %34 = arith.mulf %30, %33 : vector<8x1xf32>
    %35 = vector.broadcast %34 : vector<8x1xf32> to vector<8x128xf32>
    %36 = arith.mulf %27, %35 : vector<8x128xf32>
    %c4_i32_14 = arith.constant 4 : i32
    %37 = vector.broadcast %c4_i32_14 : i32 to vector<8x128xi32>
    %38 = arith.cmpi eq, %18, %37 : vector<8x128xi32>
    %cst_15 = arith.constant 0.000000e+00 : f32
    %39 = vector.broadcast %cst_15 : f32 to vector<8x128xf32>
    %40 = arith.select %38, %17, %39 : vector<8x128xi1>, vector<8x128xf32>
    %41 = arith.select %20, %36, %40 : vector<8x128xi1>, vector<8x128xf32>
    %c0_16 = arith.constant 0 : index
    %c0_17 = arith.constant 0 : index
    %42 = vector.load %arg3[%c0_16, %c0_17] : memref<8x128xf32, #tpu.memory_space<vmem>>, vector<8x128xf32>
    tpu.vector_store %arg3[%c0_16, %c0_17], %41 {strides = array<i32>} : memref<8x128xf32, #tpu.memory_space<vmem>>, vector<8x128xf32>,
    return
  }
  func.func @transform_0(%arg0: i32) -> (i32, i32) {
    %c0_i32 = arith.constant 0 : i32
    %c0_i32_0 = arith.constant 0 : i32
    return %arg0, %c0_i32 : i32, i32
  }
  func.func @transform_1(%arg0: i32) -> (i32, i32) {
    %c0_i32 = arith.constant 0 : i32
    %c0_i32_0 = arith.constant 0 : i32
    %c0_i32_1 = arith.constant 0 : i32
    return %c0_i32, %c0_i32_0 : i32, i32
  }
  func.func @transform_2(%arg0: i32) -> (i32, i32) {
    %c0_i32 = arith.constant 0 : i32
    %c0_i32_0 = arith.constant 0 : i32
    return %arg0, %c0_i32 : i32, i32
  }
}

</mosaic_0001>

<llo_original>
// kernel: tpu_custom_call.1
$region0: #{tpu_custom_call.1}
  #allocation0 [shape = 'u32[]', space=smem, size = 0x4, offset = 0x4, fixed_abs, tag = 'smem constant byte address 0x4 - core index']
  #allocation1 [shape = 'u32[144,128]{1,0:T(1,128)}', space=vmem, size = 0x12000, scoped, tag = 'internal scratch']
  %s0 = inlined_call_operand.hbm [shape: f32[8,16], index: 0, kind: input, shape index: {}]
  %s1 = inlined_call_operand.hbm [shape: f32[280,128], index: 1, kind: input, shape index: {}]
  %s2 = inlined_call_operand.hbm [shape: f32[8,128], index: 2, kind: output, shape index: {}]
  %s3 = sld [smem:[#allocation0]]
  $region26: #{tpu_custom_call.1} parent=0
    _
  %s5 = ssub.s32 1, %s3
  %s6 = scalar_select 0, %s5, %s3
  $region1: #{tpu_custom_call.1} parent=0
    #allocation2 [shape = 'u8[4096]{0}', space=vmem, size = 0x1000, scoped, tag = 'input window, operand 0, single buffered']
    #allocation3 [shape = 's32[1]{0}', space=sflag, size = 0x4, scoped, tag = 'scoped memory for tpu_custom_call.1']
    #allocation4 [shape = 's32[1]{0}', space=sflag, size = 0x4, scoped, tag = 'scoped memory for tpu_custom_call.1']
    #allocation5 [shape = 'u8[143360]{0}', space=vmem, size = 0x23000, scoped, tag = 'input window, operand 1, single buffered']
    #allocation6 [shape = 's32[1]{0}', space=sflag, size = 0x4, scoped, tag = 'scoped memory for tpu_custom_call.1']
    #allocation7 [shape = 'u8[4096]{0}', space=vmem, size = 0x1000, scoped, tag = 'output window, operand 0, single buffered']
    %7 = vsyncpa [#allocation3], 0
    %8 = vsyncpa [#allocation6], 0
    %9 = vsyncpa [#allocation4], 0
    // Predicated region
    $region2: #{tpu_custom_call.1} parent=1 // pred_check
      _
    $region3: #{tpu_custom_call.1} parent=1 // pred_check_branch
      %11 = sbr.rel (0) target = $region5
    $region4: #{tpu_custom_call.1} parent=1 // pred_region
      %s13 = ssub.s32 128, 128
      %14 = vsyncadd [#allocation3], %s13
      %s16 = sshll.u32 [#allocation2], 4
      %s17 = int_to_ptr.vmem [resolvable:$true] %s16
      %19 = dma.hbm_to_vmem [thread:$0]  %s0, 128, %s17, [#allocation3]
    $region5: #{tpu_custom_call.1} parent=1 // pred_fallthru
      _
    // Predicated region
    $region6: #{tpu_custom_call.1} parent=1 // pred_check
      _
    $region7: #{tpu_custom_call.1} parent=1 // pred_check_branch
      %21 = sbr.rel (0) target = $region9
    $region8: #{tpu_custom_call.1} parent=1 // pred_region
      %s23 = ssub.s32 4480, 4480
      %24 = vsyncadd [#allocation6], %s23
      %s25 = sshll.u32 [#allocation5], 4
      %s26 = int_to_ptr.vmem [resolvable:$true] %s25
      %31 = dma.hbm_to_vmem [thread:$0]  %s1, 4480, %s26, [#allocation6], 128, 128, 8
    $region9: #{tpu_custom_call.1} parent=1 // pred_fallthru
      _
    // Predicated region
    $region10: #{tpu_custom_call.1} parent=1 // pred_check
      _
    $region11: #{tpu_custom_call.1} parent=1 // pred_check_branch
      %33 = sbr.rel (0) target = $region13
    $region12: #{tpu_custom_call.1} parent=1 // pred_region
      %34 = dma.done [#allocation3], 128
    $region13: #{tpu_custom_call.1} parent=1 // pred_fallthru
      _
    // Predicated region
    $region14: #{tpu_custom_call.1} parent=1 // pred_check
      _
    $region15: #{tpu_custom_call.1} parent=1 // pred_check_branch
      %36 = sbr.rel (0) target = $region17
    $region16: #{tpu_custom_call.1} parent=1 // pred_region
      %37 = dma.done [#allocation6], 4480
    $region17: #{tpu_custom_call.1} parent=1 // pred_fallthru
      _
    %v38 = vld [vmem:[#allocation2] sm:$0xff]
    %v39 = vld [vmem:[#allocation5 + $0x110] sm:$0x1]
    %v40 = vld [vmem:[#allocation5 + $0x111] sm:$0x1]
    %v41 = vld [vmem:[#allocation5 + $0x112] sm:$0x1]
    %v42 = vld [vmem:[#allocation5] sm:$0xff]
    %v43 = vld [vmem:[#allocation5 + $0x8] sm:$0xff]
    %v44 = vlaneseq
    %v45 = vshrl.u32 %v44, 7
    %v46 = vsub.s32 0, %v45
    %v47 = vrot.slane %v39, %v46
    %vm48 = vcmask 130048
    %v50 = vsel %vm48, %v38, 0
    %52 = vmatprep.subr.mxu0 0.0
    %53 = vmatpush1.msra.mxu0 %v42
    %54 = vmatprep.subr.mxu0 0.0
    %55 = vmatpush1.msra.mxu0 %v43
    %56 = vmatprep.subr.mxu0 0.0
    %57 = vmatpush1.msra.mxu0 0.0
    %58 = vmatprep.subr.mxu0 0.0
    %59 = vmatpush1.msra.mxu0 0.0
    %60 = vmatprep.subr.mxu0 0.0
    %61 = vmatpush1.msra.mxu0 0.0
    %62 = vmatprep.subr.mxu0 0.0
    %63 = vmatpush1.msra.mxu0 0.0
    %64 = vmatprep.subr.mxu0 0.0
    %65 = vmatpush1.msra.mxu0 0.0
    %66 = vmatprep.subr.mxu0 0.0
    %67 = vmatpush1.msra.mxu0 0.0
    %68 = vmatprep.subr.mxu0 0.0
    %69 = vmatpush1.msra.mxu0 0.0
    %70 = vmatprep.subr.mxu0 0.0
    %71 = vmatpush1.msra.mxu0 0.0
    %72 = vmatprep.subr.mxu0 0.0
    %73 = vmatpush1.msra.mxu0 0.0
    %74 = vmatprep.subr.mxu0 0.0
    %75 = vmatpush1.msra.mxu0 0.0
    %76 = vmatprep.subr.mxu0 0.0
    %77 = vmatpush1.msra.mxu0 0.0
    %78 = vmatprep.subr.mxu0 0.0
    %79 = vmatpush1.msra.mxu0 0.0
    %80 = vmatprep.subr.mxu0 0.0
    %81 = vmatpush1.msra.mxu0 0.0
    %82 = vmatprep.subr.mxu0 0.0
    %83 = vmatpush1.msra.mxu0 0.0
    %84 = vmatprep.subr.mxu0 0.0
    %85 = vmatpush1.msra.mxu0 0.0
    %86 = vmatprep.subr.mxu0 0.0
    %87 = vmatpush1.msra.mxu0 0.0
    %88 = vmatprep.subr.mxu0 0.0
    %89 = vmatpush1.msra.mxu0 0.0
    %90 = vmatprep.subr.mxu0 0.0
    %91 = vmatpush1.msra.mxu0 0.0
    %92 = vmatprep.subr.mxu0 0.0
    %93 = vmatpush1.msra.mxu0 0.0
    %94 = vmatprep.subr.mxu0 0.0
    %95 = vmatpush1.msra.mxu0 0.0
    %96 = vmatprep.subr.mxu0 0.0
    %97 = vmatpush1.msra.mxu0 0.0
    %98 = vmatprep.subr.mxu0 0.0
    %99 = vmatpush1.msra.mxu0 0.0
    %100 = vmatprep.subr.mxu0 0.0
    %101 = vmatpush1.msra.mxu0 0.0
    %102 = vmatprep.subr.mxu0 0.0
    %103 = vmatpush1.msra.mxu0 0.0
    %104 = vmatprep.subr.mxu0 0.0
    %105 = vmatpush1.msra.mxu0 0.0
    %106 = vmatprep.subr.mxu0 0.0
    %107 = vmatpush1.msra.mxu0 0.0
    %108 = vmatprep.subr.mxu0 0.0
    %109 = vmatpush1.msra.mxu0 0.0
    %110 = vmatprep.subr.mxu0 0.0
    %111 = vmatpush1.msra.mxu0 0.0
    %112 = vmatprep.subr.mxu0 0.0
    %113 = vmatpush1.msra.mxu0 0.0
    %114 = vmatprep.subr.mxu0 0.0
    %115 = vmatpush1.msra.mxu0 0.0
    %116 = vmatprep.mubr.f32.mxu0 0.0
    %117 = vmatmul.mubr.f32.gmra.mrb[0].mxu0 %v50
    %v118 = vpop.f32.mrb[0].mxu0
    %v119 = vadd.f32 %v47, %v118
    %v120 = vpop.f32.mrb[0].mxu0
    %121 = vdwg.mxu0
    %v122 = vtanh.pop %v119
    %v123 = vld [vmem:[#allocation5 + $0x10] sm:$0xff]
    %v124 = vld [vmem:[#allocation5 + $0x18] sm:$0xff]
    %v125 = vld [vmem:[#allocation5 + $0x20] sm:$0xff]
    %v126 = vld [vmem:[#allocation5 + $0x28] sm:$0xff]
    %v127 = vld [vmem:[#allocation5 + $0x30] sm:$0xff]
    %v128 = vld [vmem:[#allocation5 + $0x38] sm:$0xff]
    %v129 = vld [vmem:[#allocation5 + $0x40] sm:$0xff]
    %v130 = vld [vmem:[#allocation5 + $0x48] sm:$0xff]
    %v131 = vld [vmem:[#allocation5 + $0x50] sm:$0xff]
    %v132 = vld [vmem:[#allocation5 + $0x58] sm:$0xff]
    %v133 = vld [vmem:[#allocation5 + $0x60] sm:$0xff]
    %v134 = vld [vmem:[#allocation5 + $0x68] sm:$0xff]
    %v135 = vld [vmem:[#allocation5 + $0x70] sm:$0xff]
    %v136 = vld [vmem:[#allocation5 + $0x78] sm:$0xff]
    %v137 = vld [vmem:[#allocation5 + $0x80] sm:$0xff]
    %v138 = vld [vmem:[#allocation5 + $0x88] sm:$0xff]
    %v139 = vlaneseq
    %v140 = vshrl.u32 %v139, 7
    %v141 = vsub.s32 0, %v140
    %v142 = vrot.slane %v40, %v141
    %143 = vmatprep.subr.mxu0 0.0
    %144 = vmatpush1.msra.mxu0 %v123
    %145 = vmatprep.subr.mxu0 0.0
    %146 = vmatpush1.msra.mxu0 %v124
    %147 = vmatprep.subr.mxu0 0.0
    %148 = vmatpush1.msra.mxu0 %v125
    %149 = vmatprep.subr.mxu0 0.0
    %150 = vmatpush1.msra.mxu0 %v126
    %151 = vmatprep.subr.mxu0 0.0
    %152 = vmatpush1.msra.mxu0 %v127
    %153 = vmatprep.subr.mxu0 0.0
    %154 = vmatpush1.msra.mxu0 %v128
    %155 = vmatprep.subr.mxu0 0.0
    %156 = vmatpush1.msra.mxu0 %v129
    %157 = vmatprep.subr.mxu0 0.0
    %158 = vmatpush1.msra.mxu0 %v130
    %159 = vmatprep.subr.mxu0 0.0
    %160 = vmatpush1.msra.mxu0 %v131
    %161 = vmatprep.subr.mxu0 0.0
    %162 = vmatpush1.msra.mxu0 %v132
    %163 = vmatprep.subr.mxu0 0.0
    %164 = vmatpush1.msra.mxu0 %v133
    %165 = vmatprep.subr.mxu0 0.0
    %166 = vmatpush1.msra.mxu0 %v134
    %167 = vmatprep.subr.mxu0 0.0
    %168 = vmatpush1.msra.mxu0 %v135
    %169 = vmatprep.subr.mxu0 0.0
    %170 = vmatpush1.msra.mxu0 %v136
    %171 = vmatprep.subr.mxu0 0.0
    %172 = vmatpush1.msra.mxu0 %v137
    %173 = vmatprep.subr.mxu0 0.0
    %174 = vmatpush1.msra.mxu0 %v138
    %175 = vmatprep.subr.mxu0 0.0
    %176 = vmatpush1.msra.mxu0 0.0
    %177 = vmatprep.subr.mxu0 0.0
    %178 = vmatpush1.msra.mxu0 0.0
    %179 = vmatprep.subr.mxu0 0.0
    %180 = vmatpush1.msra.mxu0 0.0
    %181 = vmatprep.subr.mxu0 0.0
    %182 = vmatpush1.msra.mxu0 0.0
    %183 = vmatprep.subr.mxu0 0.0
    %184 = vmatpush1.msra.mxu0 0.0
    %185 = vmatprep.subr.mxu0 0.0
    %186 = vmatpush1.msra.mxu0 0.0
    %187 = vmatprep.subr.mxu0 0.0
    %188 = vmatpush1.msra.mxu0 0.0
    %189 = vmatprep.subr.mxu0 0.0
    %190 = vmatpush1.msra.mxu0 0.0
    %191 = vmatprep.subr.mxu0 0.0
    %192 = vmatpush1.msra.mxu0 0.0
    %193 = vmatprep.subr.mxu0 0.0
    %194 = vmatpush1.msra.mxu0 0.0
    %195 = vmatprep.subr.mxu0 0.0
    %196 = vmatpush1.msra.mxu0 0.0
    %197 = vmatprep.subr.mxu0 0.0
    %198 = vmatpush1.msra.mxu0 0.0
    %199 = vmatprep.subr.mxu0 0.0
    %200 = vmatpush1.msra.mxu0 0.0
    %201 = vmatprep.subr.mxu0 0.0
    %202 = vmatpush1.msra.mxu0 0.0
    %203 = vmatprep.subr.mxu0 0.0
    %204 = vmatpush1.msra.mxu0 0.0
    %205 = vmatprep.subr.mxu0 0.0
    %206 = vmatpush1.msra.mxu0 0.0
    %207 = vmatprep.mubr.f32.mxu0 0.0
    %208 = vmatmul.mubr.f32.gmra.mrb[0].mxu0 %v122
    %v209 = vpop.f32.mrb[0].mxu0
    %v210 = vadd.f32 %v142, %v209
    %v211 = vpop.f32.mrb[0].mxu0
    %212 = vdwg.mxu0
    %v213 = vtanh.pop %v210
    %v214 = vld [vmem:[#allocation5 + $0x90] sm:$0xff]
    %v215 = vld [vmem:[#allocation5 + $0x98] sm:$0xff]
    %v216 = vld [vmem:[#allocation5 + $0xa0] sm:$0xff]
    %v217 = vld [vmem:[#allocation5 + $0xa8] sm:$0xff]
    %v218 = vld [vmem:[#allocation5 + $0xb0] sm:$0xff]
    %v219 = vld [vmem:[#allocation5 + $0xb8] sm:$0xff]
    %v220 = vld [vmem:[#allocation5 + $0xc0] sm:$0xff]
    %v221 = vld [vmem:[#allocation5 + $0xc8] sm:$0xff]
    %v222 = vld [vmem:[#allocation5 + $0xd0] sm:$0xff]
    %v223 = vld [vmem:[#allocation5 + $0xd8] sm:$0xff]
    %v224 = vld [vmem:[#allocation5 + $0xe0] sm:$0xff]
    %v225 = vld [vmem:[#allocation5 + $0xe8] sm:$0xff]
    %v226 = vld [vmem:[#allocation5 + $0xf0] sm:$0xff]
    %v227 = vld [vmem:[#allocation5 + $0xf8] sm:$0xff]
    %v228 = vld [vmem:[#allocation5 + $0x100] sm:$0xff]
    %v229 = vld [vmem:[#allocation5 + $0x108] sm:$0xff]
    %v230 = vlaneseq
    %v231 = vshrl.u32 %v230, 7
    %v232 = vsub.s32 0, %v231
    %v233 = vrot.slane %v41, %v232
    %234 = vmatprep.subr.mxu0 0.0
    %235 = vmatpush1.msra.mxu0 %v214
    %236 = vmatprep.subr.mxu0 0.0
    %237 = vmatpush1.msra.mxu0 %v215
    %238 = vmatprep.subr.mxu0 0.0
    %239 = vmatpush1.msra.mxu0 %v216
    %240 = vmatprep.subr.mxu0 0.0
    %241 = vmatpush1.msra.mxu0 %v217
    %242 = vmatprep.subr.mxu0 0.0
    %243 = vmatpush1.msra.mxu0 %v218
    %244 = vmatprep.subr.mxu0 0.0
    %245 = vmatpush1.msra.mxu0 %v219
    %246 = vmatprep.subr.mxu0 0.0
    %247 = vmatpush1.msra.mxu0 %v220
    %248 = vmatprep.subr.mxu0 0.0
    %249 = vmatpush1.msra.mxu0 %v221
    %250 = vmatprep.subr.mxu0 0.0
    %251 = vmatpush1.msra.mxu0 %v222
    %252 = vmatprep.subr.mxu0 0.0
    %253 = vmatpush1.msra.mxu0 %v223
    %254 = vmatprep.subr.mxu0 0.0
    %255 = vmatpush1.msra.mxu0 %v224
    %256 = vmatprep.subr.mxu0 0.0
    %257 = vmatpush1.msra.mxu0 %v225
    %258 = vmatprep.subr.mxu0 0.0
    %259 = vmatpush1.msra.mxu0 %v226
    %260 = vmatprep.subr.mxu0 0.0
    %261 = vmatpush1.msra.mxu0 %v227
    %262 = vmatprep.subr.mxu0 0.0
    %263 = vmatpush1.msra.mxu0 %v228
    %264 = vmatprep.subr.mxu0 0.0
    %265 = vmatpush1.msra.mxu0 %v229
    %266 = vmatprep.subr.mxu0 0.0
    %267 = vmatpush1.msra.mxu0 0.0
    %268 = vmatprep.subr.mxu0 0.0
    %269 = vmatpush1.msra.mxu0 0.0
    %270 = vmatprep.subr.mxu0 0.0
    %271 = vmatpush1.msra.mxu0 0.0
    %272 = vmatprep.subr.mxu0 0.0
    %273 = vmatpush1.msra.mxu0 0.0
    %274 = vmatprep.subr.mxu0 0.0
    %275 = vmatpush1.msra.mxu0 0.0
    %276 = vmatprep.subr.mxu0 0.0
    %277 = vmatpush1.msra.mxu0 0.0
    %278 = vmatprep.subr.mxu0 0.0
    %279 = vmatpush1.msra.mxu0 0.0
    %280 = vmatprep.subr.mxu0 0.0
    %281 = vmatpush1.msra.mxu0 0.0
    %282 = vmatprep.subr.mxu0 0.0
    %283 = vmatpush1.msra.mxu0 0.0
    %284 = vmatprep.subr.mxu0 0.0
    %285 = vmatpush1.msra.mxu0 0.0
    %286 = vmatprep.subr.mxu0 0.0
    %287 = vmatpush1.msra.mxu0 0.0
    %288 = vmatprep.subr.mxu0 0.0
    %289 = vmatpush1.msra.mxu0 0.0
    %290 = vmatprep.subr.mxu0 0.0
    %291 = vmatpush1.msra.mxu0 0.0
    %292 = vmatprep.subr.mxu0 0.0
    %293 = vmatpush1.msra.mxu0 0.0
    %294 = vmatprep.subr.mxu0 0.0
    %295 = vmatpush1.msra.mxu0 0.0
    %296 = vmatprep.subr.mxu0 0.0
    %297 = vmatpush1.msra.mxu0 0.0
    %298 = vmatprep.mubr.f32.mxu0 0.0
    %299 = vmatmul.mubr.f32.gmra.mrb[0].mxu0 %v213
    %v300 = vpop.f32.mrb[0].mxu0
    %v301 = vadd.f32 %v233, %v300
    %v302 = vpop.f32.mrb[0].mxu0
    %303 = vdwg.mxu0
    %v304 = vlaneseq
    %v305 = vand.u32 %v304, 127
    %vm306 = vcmp.lt.s32.totalorder %v305, 4
    %v307 = vsel %vm306, %v301, -1e+30
    %308 = vmax.xlane.f32.xlu0 %v307
    %v309 = vpop.xlane.xlu0 %308
    %v310 = vsub.f32 %v307, %v309
    %v311 = vmul.f32 %v310, 1.442695
    %v312 = vpow.pop %v311
    %313 = vadd.xlane.f32.xlu0 %v312
    %v314 = vpop.xlane.xlu0 %313
    %v315 = vrcp.pop %v314
    %v316 = vmul.f32 %v314, %v315
    %v317 = vsub.f32 2.0, %v316
    %v318 = vmul.f32 %v315, %v317
    %v319 = vmul.f32 %v312, %v318
    %vm320 = vcmp.eq.s32.totalorder %v305, 4
    %v321 = vsel %vm320, %v301, 0.0
    %v322 = vsel %vm306, %v319, %v321
    %323 = vst [vmem:[#allocation7] sm:$0xff] %v322
    // Predicated region
    $region18: #{tpu_custom_call.1} parent=1 // pred_check
      _
    $region19: #{tpu_custom_call.1} parent=1 // pred_check_branch
      %325 = sbr.rel (0) target = $region21
    $region20: #{tpu_custom_call.1} parent=1 // pred_region
      %s327 = ssub.s32 128, 128
      %328 = vsyncadd [#allocation4], %s327
      %s330 = sshll.u32 [#allocation7], 4
      %s331 = int_to_ptr.vmem [resolvable:$true] %s330
      %333 = dma.vmem_to_hbm [thread:$0]  %s331, 128, %s2, [#allocation4]
    $region21: #{tpu_custom_call.1} parent=1 // pred_fallthru
      _
    // Predicated region
    $region22: #{tpu_custom_call.1} parent=1 // pred_check
      _
    $region23: #{tpu_custom_call.1} parent=1 // pred_check_branch
      %335 = sbr.rel (0) target = $region25
    $region24: #{tpu_custom_call.1} parent=1 // pred_region
      %336 = dma.done [#allocation4], 128
    $region25: #{tpu_custom_call.1} parent=1 // pred_fallthru
      _
    %337 = vsyncpa [#allocation3], 1
    %338 = vsyncpa [#allocation6], 1
    %339 = vsyncpa [#allocation4], 1

</llo_original>
